<compile_context>
chip_gen: v7x
topology: tpu7x:2x2x1
jax: 0.10.0
libtpu: 0.0.40
codegen_flags: <defaults>
</compile_context>

<pallas_src>
import jax
import jax.numpy as jnp
from jax.experimental import pallas as pl
from jax.experimental.pallas import tpu as pltpu

LANE = 128       # vreg lane width
SUBLANE = 8      # f32 sublanes per vreg
# ~1 MiB of f32 per input plane per grid step.
TARGET_PLANE_ELEMS = 256 * 1024


def linear_relu_kernel(w_ref, b_ref, x_ref, o_ref):
    # w_ref: SMEM (in_f,) f32 scalars; b_ref: SMEM (1,) f32 scalar
    # x_ref: VMEM (in_f, tR, C) sublane+lane-dense batch plane tile
    # o_ref: VMEM (tR, C)
    in_f = x_ref.shape[0]
    acc = x_ref[0] * w_ref[0]
    for k in range(1, in_f):            # in_f == 2: statically unrolled VPU FMA
        acc = acc + x_ref[k] * w_ref[k]
    o_ref[...] = jnp.maximum(acc + b_ref[0], 0.0)


def simple_nn_forward(x, w, b):
    """Pallas equivalent of F.relu(nn.Linear(2, 1)(x)) for x of shape (B, 2)."""
    x = x.astype(jnp.float32)
    B, in_f = x.shape
    out_f, w_in = w.shape
    assert w_in == in_f
    # Kernel writes a single (tR, C) output plane: only out_features == 1.
    assert out_f == 1

    # Pack the batch into (R, C) planes: C multiple of 128 lanes, rows a
    # multiple of 8 sublanes.  Row tile tR sized so one input plane block is
    # ~1 MiB (f32); padding is <= one (8,128) tile for small B, <2% for large.
    C = max(LANE, min(4 * LANE, pl.cdiv(B, LANE) * LANE))
    rows = pl.cdiv(B, C)
    rows_pad = pl.cdiv(rows, SUBLANE) * SUBLANE
    tR = min(rows_pad,
             max(SUBLANE, (TARGET_PLANE_ELEMS // C) // SUBLANE * SUBLANE))
    R = pl.cdiv(rows_pad, tR) * tR
    b_pad = R * C

    # Layout plumbing: one transpose+pad pass.
    # TODO(synk): if the producer can emit feature-major (in_f, R, C) directly,
    # this extra HBM pass (and the final un-pack) disappears entirely.
    x_planes = (jnp.zeros((in_f, b_pad), jnp.float32)
                .at[:, :B].set(x.T)
                .reshape(in_f, R, C))
    w_flat = w.reshape(-1).astype(jnp.float32)   # (in_f,) -> SMEM scalars
    b_flat = b.reshape(-1).astype(jnp.float32)   # (1,)    -> SMEM scalar

    grid = (R // tR,)
    y_planes = pl.pallas_call(
        linear_relu_kernel,
        out_shape=jax.ShapeDtypeStruct((R, C), jnp.float32),
        grid_spec=pltpu.PrefetchScalarGridSpec(
            num_scalar_prefetch=0,
            grid=grid,
            in_specs=[
                pl.BlockSpec(memory_space=pltpu.MemorySpace.SMEM),   # weights
                pl.BlockSpec(memory_space=pltpu.MemorySpace.SMEM),   # bias
                pl.BlockSpec((in_f, tR, C), lambda i: (0, i, 0)),    # x tile
            ],
            out_specs=pl.BlockSpec((tR, C), lambda i: (i, 0)),
        ),
        compiler_params=pltpu.CompilerParams(
            dimension_semantics=("parallel",),   # lets v7x's 2 TCs split rows
        ),
    )(w_flat, b_flat, x_planes)

    # Padded slots hold relu(bias); drop them and restore (B, 1).
    return y_planes.reshape(b_pad)[:B].reshape(B, out_f)


if __name__ == "__main__":
    key = jax.random.PRNGKey(0)
    k_x, k_w, k_b, k_x2 = jax.random.split(key, 4)

    # nn.Linear(2, 1, bias=True): weight (1, 2), bias (1,).
    # Deterministic init mimicking PyTorch uniform(-1/sqrt(fan_in), +1/sqrt(fan_in)).
    bound = 1.0 / jnp.sqrt(2.0)
    w = jax.random.uniform(k_w, (1, 2), jnp.float32, -bound, bound)
    b = jax.random.uniform(k_b, (1,), jnp.float32, -bound, bound)

    # TODO(synk): the module's `print(f'Input={x}')` debug print is omitted
    # (host-side printing has no useful Pallas equivalent).

    # Small batch consistent with the module's (B, 2) forward.
    B = 8
    x = jax.random.normal(k_x, (B, 2), jnp.float32)
    out = jax.block_until_ready(simple_nn_forward(x, w, b))
    ref = jnp.maximum(x @ w.T + b.reshape(1, 1), 0.0)
    assert out.shape == (B, 1)
    assert jnp.allclose(out, ref, atol=1e-5, rtol=1e-5)

    # Second check exercising non-trivial padding of the (R, C) planes.
    B2 = 2500
    x2 = jax.random.normal(k_x2, (B2, 2), jnp.float32)
    out2 = jax.block_until_ready(simple_nn_forward(x2, w, b))
    ref2 = jnp.maximum(x2 @ w.T + b.reshape(1, 1), 0.0)
    assert out2.shape == (B2, 1)
    assert jnp.allclose(out2, ref2, atol=1e-5, rtol=1e-5)

    print("KERNEL_OK")
</pallas_src>

<mosaic_0001>
module attributes {stable_mosaic.version = 11 : i64} {
  func.func @linear_relu_kernel(%arg0: i32, %arg1: memref<2xf32, #tpu.memory_space<smem>>, %arg2: memref<1xf32, #tpu.memory_space<smem>>, %arg3: memref<2x8x128xf32, #tpu.memory_space<vmem>>, %arg4: memref<8x128xf32, #tpu.memory_space<vmem>>) attributes {dimension_semantics = [#tpu.dimension_semantics<parallel>], iteration_bounds = array<i64: 1>, scalar_prefetch = 0 : i64, scratch_operands = 0 : i64, tpu.core_type = #tpu.core_type<tc>, window_params = [{transform_indices = @transform_0, window_bounds = array<i64: 2>}, {transform_indices = @transform_1, window_bounds = array<i64: 1>}, {transform_indices = @transform_2, window_bounds = array<i64: 2, 8, 128>}, {transform_indices = @transform_3, window_bounds = array<i64: 8, 128>}]} {
    %c0 = arith.constant 0 : index
    %c0_0 = arith.constant 0 : index
    %c0_1 = arith.constant 0 : index
    %0 = vector.load %arg3[%c0, %c0_0, %c0_1] : memref<2x8x128xf32, #tpu.memory_space<vmem>>, vector<1x8x128xf32>
    %1 = vector.shape_cast %0 : vector<1x8x128xf32> to vector<8x128xf32>
    %c0_2 = arith.constant 0 : index
    %2 = memref.load %arg1[%c0_2] : memref<2xf32, #tpu.memory_space<smem>>
    %3 = vector.broadcast %2 : f32 to vector<8x128xf32>
    %4 = arith.mulf %1, %3 : vector<8x128xf32>
    %c1 = arith.constant 1 : index
    %c0_3 = arith.constant 0 : index
    %c0_4 = arith.constant 0 : index
    %5 = vector.load %arg3[%c1, %c0_3, %c0_4] : memref<2x8x128xf32, #tpu.memory_space<vmem>>, vector<1x8x128xf32>
    %6 = vector.shape_cast %5 : vector<1x8x128xf32> to vector<8x128xf32>
    %c1_5 = arith.constant 1 : index
    %7 = memref.load %arg1[%c1_5] : memref<2xf32, #tpu.memory_space<smem>>
    %8 = vector.broadcast %7 : f32 to vector<8x128xf32>
    %9 = arith.mulf %6, %8 : vector<8x128xf32>
    %10 = arith.addf %4, %9 : vector<8x128xf32>
    %c0_6 = arith.constant 0 : index
    %11 = memref.load %arg2[%c0_6] : memref<1xf32, #tpu.memory_space<smem>>
    %12 = vector.broadcast %11 : f32 to vector<8x128xf32>
    %13 = arith.addf %10, %12 : vector<8x128xf32>
    %cst = arith.constant 0.000000e+00 : f32
    %14 = vector.broadcast %cst : f32 to vector<8x128xf32>
    %15 = arith.maximumf %13, %14 : vector<8x128xf32>
    %c0_7 = arith.constant 0 : index
    %c0_8 = arith.constant 0 : index
    %16 = vector.load %arg4[%c0_7, %c0_8] : memref<8x128xf32, #tpu.memory_space<vmem>>, vector<8x128xf32>
    tpu.vector_store %arg4[%c0_7, %c0_8], %15 {strides = array<i32>} : memref<8x128xf32, #tpu.memory_space<vmem>>, vector<8x128xf32>,
    return
  }
  func.func @transform_0(%arg0: i32) -> i32 {
    %c0_i32 = arith.constant 0 : i32
    %c0_i32_0 = arith.constant 0 : i32
    return %c0_i32 : i32
  }
  func.func @transform_1(%arg0: i32) -> i32 {
    %c0_i32 = arith.constant 0 : i32
    %c0_i32_0 = arith.constant 0 : i32
    return %c0_i32 : i32
  }
  func.func @transform_2(%arg0: i32) -> (i32, i32, i32) {
    %c0_i32 = arith.constant 0 : i32
    %c0_i32_0 = arith.constant 0 : i32
    %c0_i32_1 = arith.constant 0 : i32
    return %c0_i32, %arg0, %c0_i32_0 : i32, i32, i32
  }
  func.func @transform_3(%arg0: i32) -> (i32, i32) {
    %c0_i32 = arith.constant 0 : i32
    %c0_i32_0 = arith.constant 0 : i32
    return %arg0, %c0_i32 : i32, i32
  }
}

</mosaic_0001>

<llo_original>
// kernel: tpu_custom_call.1
$region0: #{tpu_custom_call.1}
  #allocation0 [shape = 'u32[]', space=smem, size = 0x4, offset = 0x4, fixed_abs, tag = 'smem constant byte address 0x4 - core index']
  #allocation1 [shape = 'u32[144,128]{1,0:T(1,128)}', space=vmem, size = 0x12000, scoped, tag = 'internal scratch']
  #allocation2 [shape = 'f32[1]{0:T(128)S(6)}', space=smem, size = 0x200, scoped, tag = 'scoped memory for tpu_custom_call.1']
  %s0 = inlined_call_operand.vmem [shape: f32[2], index: 0, kind: input, shape index: {}]
  %s1 = inlined_call_operand.<no memory space> [shape: f32[1], index: 1, kind: input, shape index: {}]
  %s2 = inlined_call_operand.hbm [shape: f32[2,8,128], index: 2, kind: input, shape index: {}]
  %s3 = inlined_call_operand.hbm [shape: f32[8,128], index: 3, kind: output, shape index: {}]
  %s4 = sld [smem:[#allocation0]]
  $region30: #{tpu_custom_call.1} parent=0
    _
  %s6 = ssub.s32 1, %s4
  %s7 = scalar_select 0, %s6, %s4
  %8 = sst [smem:[#allocation2]] %s1
  $region1: #{tpu_custom_call.1} parent=0
    #allocation3 [shape = 'u8[512]{0}', space=smem, size = 0x200, scoped, tag = 'input window, operand 0, single buffered']
    #allocation4 [shape = 's32[1]{0}', space=sflag, size = 0x4, scoped, tag = 'scoped memory for tpu_custom_call.1']
    #allocation5 [shape = 's32[1]{0}', space=sflag, size = 0x4, scoped, tag = 'scoped memory for tpu_custom_call.1']
    #allocation6 [shape = 's32[1]{0}', space=sflag, size = 0x4, scoped, tag = 'scoped memory for tpu_custom_call.1']
    #allocation7 [shape = 'u8[8192]{0}', space=vmem, size = 0x2000, scoped, tag = 'input window, operand 2, single buffered']
    #allocation8 [shape = 'u8[4096]{0}', space=vmem, size = 0x1000, scoped, tag = 'output window, operand 0, single buffered']
    %9 = vsyncpa [#allocation6], 0
    %10 = vsyncpa [#allocation4], 0
    %11 = vsyncpa [#allocation5], 0
    // Predicated region
    $region2: #{tpu_custom_call.1} parent=1 // pred_check
      _
    $region3: #{tpu_custom_call.1} parent=1 // pred_check_branch
      %13 = sbr.rel (0) target = $region5
    $region4: #{tpu_custom_call.1} parent=1 // pred_region
      %s15 = ssub.s32 16, 16
      %16 = vsyncadd [#allocation6], %s15
      %s18 = sshll.u32 %s0, 4
      %s19 = int_to_ptr.vmem [resolvable:$true] %s18
      %21 = dma.vmem_to_smem %s19, 16, [#allocation3], [#allocation6]
    $region5: #{tpu_custom_call.1} parent=1 // pred_fallthru
      _
    // Predicated region
    $region6: #{tpu_custom_call.1} parent=1 // pred_check
      _
    $region7: #{tpu_custom_call.1} parent=1 // pred_check_branch
      %23 = sbr.rel (0) target = $region9
    $region8: #{tpu_custom_call.1} parent=1 // pred_region
      _
    $region9: #{tpu_custom_call.1} parent=1 // pred_fallthru
      _
    // Predicated region
    $region10: #{tpu_custom_call.1} parent=1 // pred_check
      _
    $region11: #{tpu_custom_call.1} parent=1 // pred_check_branch
      %25 = sbr.rel (0) target = $region13
    $region12: #{tpu_custom_call.1} parent=1 // pred_region
      %s27 = ssub.s32 256, 256
      %28 = vsyncadd [#allocation4], %s27
      %s29 = sshll.u32 [#allocation7], 4
      %s30 = int_to_ptr.vmem [resolvable:$true] %s29
      %35 = dma.hbm_to_vmem [thread:$0]  %s2, 256, %s30, [#allocation4], 128, 128, 8
    $region13: #{tpu_custom_call.1} parent=1 // pred_fallthru
      _
    // Predicated region
    $region14: #{tpu_custom_call.1} parent=1 // pred_check
      _
    $region15: #{tpu_custom_call.1} parent=1 // pred_check_branch
      %37 = sbr.rel (0) target = $region17
    $region16: #{tpu_custom_call.1} parent=1 // pred_region
      %38 = dma.done [#allocation6], 16
    $region17: #{tpu_custom_call.1} parent=1 // pred_fallthru
      _
    // Predicated region
    $region18: #{tpu_custom_call.1} parent=1 // pred_check
      _
    $region19: #{tpu_custom_call.1} parent=1 // pred_check_branch
      %40 = sbr.rel (0) target = $region21
    $region20: #{tpu_custom_call.1} parent=1 // pred_region
      %41 = dma.done [#allocation4], 256
    $region21: #{tpu_custom_call.1} parent=1 // pred_fallthru
      _
    %42 = sfence
    %v43 = vld [vmem:[#allocation7] sm:$0xff]
    %s44 = sld [smem:[#allocation3]]
    %v45 = vstv %s44
    %v46 = vmul.f32 %v43, %v45
    %s47 = scalar_lea.vmem [#allocation7], 8
    %v48 = vld [vmem:[%s47] sm:$0xff]
    %s49 = sld [smem:[#allocation3 + $0x1]]
    %v50 = vstv %s49
    %v51 = vmul.f32 %v48, %v50
    %v52 = vadd.f32 %v46, %v51
    %s53 = sld [smem:[#allocation2]]
    %v54 = vstv %s53
    %v55 = vadd.f32 %v52, %v54
    %v56 = vmax.f32 %v55, 0.0
    %57 = vst [vmem:[#allocation8] sm:$0xff] %v56
    // Predicated region
    $region22: #{tpu_custom_call.1} parent=1 // pred_check
      _
    $region23: #{tpu_custom_call.1} parent=1 // pred_check_branch
      %59 = sbr.rel (0) target = $region25
    $region24: #{tpu_custom_call.1} parent=1 // pred_region
      %s61 = ssub.s32 128, 128
      %62 = vsyncadd [#allocation5], %s61
      %s64 = sshll.u32 [#allocation8], 4
      %s65 = int_to_ptr.vmem [resolvable:$true] %s64
      %67 = dma.vmem_to_hbm [thread:$0]  %s65, 128, %s3, [#allocation5]
    $region25: #{tpu_custom_call.1} parent=1 // pred_fallthru
      _
    // Predicated region
    $region26: #{tpu_custom_call.1} parent=1 // pred_check
      _
    $region27: #{tpu_custom_call.1} parent=1 // pred_check_branch
      %69 = sbr.rel (0) target = $region29
    $region28: #{tpu_custom_call.1} parent=1 // pred_region
      %70 = dma.done [#allocation5], 128
    $region29: #{tpu_custom_call.1} parent=1 // pred_fallthru
      _
    %71 = vsyncpa [#allocation4], 1
    %72 = vsyncpa [#allocation5], 1
    %73 = vsyncpa [#allocation6], 1

</llo_original>
